<compile_context>
chip_gen: v5e
topology: v5e:2x2
jax: 0.10.0
libtpu: 0.0.40
codegen_flags: <defaults>
</compile_context>

<pallas_src>
import functools

import jax
import jax.numpy as jnp
from jax import lax
from jax.experimental import pallas as pl
from jax.experimental.pallas import tpu as pltpu

EPS = 1e-5
TM_MAX = 512                        # 512-row tiles ~ HBM roofline; also keeps
                                    # double-buffered tiles within v7x's 32 MiB
                                    # scoped VMEM at real ResNet K (=9*Cin).
VMEM_LIMIT_BYTES = 32 * 1024 * 1024


def _round_up(x, n):
    return ((x + n - 1) // n) * n


def _row_tiling(m, tm_max=TM_MAX):
    """Pick a row tile (multiple of 8) and the padded row count."""
    tm = min(tm_max, _round_up(m, 8))
    return tm, _round_up(m, tm)


def _pad_rows(x, m_pad):
    m = x.shape[0]
    if m_pad == m:
        return x
    return jnp.pad(x, ((0, m_pad - m), (0, 0)))


# ---------------- Pallas kernels ----------------

def _matmul_stats_kernel(a_ref, b_ref, o_ref, sum_ref, sq_ref):
    """MXU matmul tile + fused per-channel sum / sum-of-squares reduction."""
    y = jnp.dot(a_ref[...], b_ref[...], preferred_element_type=jnp.float32)
    o_ref[...] = y.astype(o_ref.dtype)

    # (1, C) stats outputs are resident across the M grid (constant index map);
    # init on the first step, accumulate afterwards -> axis is "arbitrary".
    @pl.when(pl.program_id(0) == 0)
    def _():
        sum_ref[...] = jnp.zeros_like(sum_ref)
        sq_ref[...] = jnp.zeros_like(sq_ref)

    sum_ref[...] += jnp.sum(y, axis=0, keepdims=True)
    sq_ref[...] += jnp.sum(y * y, axis=0, keepdims=True)


def pallas_matmul_stats(a, b, out_dtype):
    """(M, K) @ (K, C) -> (M, C) plus per-channel sum / sum-of-squares."""
    m, k = a.shape
    k2, c = b.shape
    assert k == k2
    tm, m_pad = _row_tiling(m)
    a_p = _pad_rows(a, m_pad)        # zero rows -> zero output rows -> exact stats
    y, s, sq = pl.pallas_call(
        _matmul_stats_kernel,
        out_shape=(jax.ShapeDtypeStruct((m_pad, c), out_dtype),
                   jax.ShapeDtypeStruct((1, c), jnp.float32),
                   jax.ShapeDtypeStruct((1, c), jnp.float32)),
        grid=(m_pad // tm,),
        in_specs=[pl.BlockSpec((tm, k), lambda i: (i, 0)),
                  pl.BlockSpec((k, c), lambda i: (0, 0))],   # weight stays resident
        out_specs=(pl.BlockSpec((tm, c), lambda i: (i, 0)),
                   pl.BlockSpec((1, c), lambda i: (0, 0)),
                   pl.BlockSpec((1, c), lambda i: (0, 0))),
        compiler_params=pltpu.CompilerParams(
            dimension_semantics=("arbitrary",),
            vmem_limit_bytes=VMEM_LIMIT_BYTES),
    )(a_p, b)
    if m_pad != m:
        y = y[:m]
    return y, s, sq


def _bn_act_kernel(y_ref, scale_ref, shift_ref, o_ref, *, relu):
    # Elementwise math in f32 (v5e has no native bf16 VPU); downcast on store.
    out = y_ref[...].astype(jnp.float32) * scale_ref[...] + shift_ref[...]
    if relu:
        out = jnp.maximum(out, 0.0)
    o_ref[...] = out.astype(o_ref.dtype)


def pallas_bn_act(y, scale, shift, *, relu, out_dtype):
    m, c = y.shape
    tm, m_pad = _row_tiling(m)
    y_p = _pad_rows(y, m_pad)
    out = pl.pallas_call(
        functools.partial(_bn_act_kernel, relu=relu),
        out_shape=jax.ShapeDtypeStruct((m_pad, c), out_dtype),
        grid=(m_pad // tm,),
        in_specs=[pl.BlockSpec((tm, c), lambda i: (i, 0)),
                  pl.BlockSpec((1, c), lambda i: (0, 0)),
                  pl.BlockSpec((1, c), lambda i: (0, 0))],
        out_specs=pl.BlockSpec((tm, c), lambda i: (i, 0)),
        compiler_params=pltpu.CompilerParams(
            dimension_semantics=("parallel",),
            vmem_limit_bytes=VMEM_LIMIT_BYTES),
    )(y_p, scale, shift)
    return out[:m] if m_pad != m else out


def _bn_shortcut_relu_kernel(y_ref, r_ref, sc_m_ref, sh_m_ref, sc_r_ref, sh_r_ref,
                             o_ref):
    """out = relu( BN2(y) + BN_sc(r) ); identity shortcut uses scale=1/shift=0."""
    y = y_ref[...].astype(jnp.float32)
    r = r_ref[...].astype(jnp.float32)
    out = (y * sc_m_ref[...] + sh_m_ref[...]
           + r * sc_r_ref[...] + sh_r_ref[...])
    o_ref[...] = jnp.maximum(out, 0.0).astype(o_ref.dtype)


def pallas_bn_shortcut_relu(y, res, sc_main, sh_main, sc_res, sh_res):
    m, c = y.shape
    tm, m_pad = _row_tiling(m)
    y_p = _pad_rows(y, m_pad)
    r_p = _pad_rows(res, m_pad)
    out = pl.pallas_call(
        _bn_shortcut_relu_kernel,
        out_shape=jax.ShapeDtypeStruct((m_pad, c), jnp.float32),
        grid=(m_pad // tm,),
        in_specs=[pl.BlockSpec((tm, c), lambda i: (i, 0)),
                  pl.BlockSpec((tm, c), lambda i: (i, 0)),
                  pl.BlockSpec((1, c), lambda i: (0, 0)),
                  pl.BlockSpec((1, c), lambda i: (0, 0)),
                  pl.BlockSpec((1, c), lambda i: (0, 0)),
                  pl.BlockSpec((1, c), lambda i: (0, 0))],
        out_specs=pl.BlockSpec((tm, c), lambda i: (i, 0)),
        compiler_params=pltpu.CompilerParams(
            dimension_semantics=("parallel",),
            vmem_limit_bytes=VMEM_LIMIT_BYTES),
    )(y_p, r_p, sc_main, sh_main, sc_res, sh_res)
    return out[:m] if m_pad != m else out


# ---------------- plain-JAX glue ----------------

def im2col_3x3(x_nhwc, stride):
    """3x3, pad=1 im2col. Returns (N*Ho*Wo, 9*Cin), Ho, Wo. Keeps input dtype."""
    n, h, w, c = x_nhwc.shape
    xp = jnp.pad(x_nhwc, ((0, 0), (1, 1), (1, 1), (0, 0)))
    ho = (h + 2 - 3) // stride + 1
    wo = (w + 2 - 3) // stride + 1
    cols = []
    for kh in range(3):
        for kw in range(3):
            cols.append(xp[:, kh:kh + (ho - 1) * stride + 1:stride,
                           kw:kw + (wo - 1) * stride + 1:stride, :])
    pat = jnp.concatenate(cols, axis=-1)          # (N, Ho, Wo, 9*C)
    return pat.reshape(n * ho * wo, 9 * c), ho, wo


def fold_bn(s, sq, m, gamma, beta, eps=EPS):
    """Batch sums -> per-channel affine scale/shift (training-mode BN).

    Note: single-pass E[y^2]-E[y]^2 variance (sums accumulated in f32 in the
    matmul epilogue); clamped at 0 to guard against tiny cancellation.
    """
    mean = s / m
    var = jnp.maximum(sq / m - mean * mean, 0.0)   # biased variance
    invstd = lax.rsqrt(var + eps)
    scale = gamma.reshape(1, -1).astype(jnp.float32) * invstd
    shift = beta.reshape(1, -1).astype(jnp.float32) - mean * scale
    return scale, shift


def residual_block_forward(x_nchw, params, stride=1, compute_dtype=jnp.bfloat16):
    x = jnp.transpose(x_nchw, (0, 2, 3, 1)).astype(jnp.float32)   # NHWC
    n, h, w, cin = x.shape
    cout = params["conv1_w"].shape[0]

    # conv1 (stats fused into the matmul epilogue) -> bn1 -> relu
    a1, ho, wo = im2col_3x3(x.astype(compute_dtype), stride)
    w1 = (params["conv1_w"].transpose(2, 3, 1, 0)
          .reshape(9 * cin, cout).astype(compute_dtype))
    m1 = n * ho * wo
    y1, s1, sq1 = pallas_matmul_stats(a1, w1, out_dtype=compute_dtype)
    sc1, sh1 = fold_bn(s1, sq1, m1, params["bn1_gamma"], params["bn1_beta"])
    h1 = pallas_bn_act(y1, sc1, sh1, relu=True, out_dtype=compute_dtype)

    # conv2 (stats fused) -> bn2 folded into the final fused kernel
    a2, ho2, wo2 = im2col_3x3(h1.reshape(n, ho, wo, cout), 1)
    w2 = (params["conv2_w"].transpose(2, 3, 1, 0)
          .reshape(9 * cout, cout).astype(compute_dtype))
    m2 = n * ho2 * wo2
    y2, s2, sq2 = pallas_matmul_stats(a2, w2, out_dtype=compute_dtype)
    sc2, sh2 = fold_bn(s2, sq2, m2, params["bn2_gamma"], params["bn2_beta"])

    # shortcut: projection BN is folded into the final fused kernel as well
    if stride != 1 or cin != cout:
        xs = x[:, ::stride, ::stride, :].reshape(-1, cin).astype(compute_dtype)
        ws = (params["sc_conv_w"].transpose(2, 3, 1, 0)
              .reshape(cin, cout).astype(compute_dtype))
        res, ss, ssq = pallas_matmul_stats(xs, ws, out_dtype=compute_dtype)
        scs, shs = fold_bn(ss, ssq, m2,
                           params["sc_bn_gamma"], params["sc_bn_beta"])
    else:
        res = x.reshape(-1, cin)                       # identity shortcut (f32)
        scs = jnp.ones((1, cout), jnp.float32)
        shs = jnp.zeros((1, cout), jnp.float32)

    # bn2 + shortcut-bn + add + relu, single fused pass
    out = pallas_bn_shortcut_relu(y2, res, sc2, sh2, scs, shs)
    return out.reshape(n, ho2, wo2, cout).transpose(0, 3, 1, 2)    # back to NCHW


# ---------------- pure-JAX reference (correctness check) ----------------

def ref_forward(x, p, stride, eps=EPS):
    def conv(x, w, s, pad):
        return lax.conv_general_dilated(
            x, w, (s, s), [(pad, pad), (pad, pad)],
            dimension_numbers=("NCHW", "OIHW", "NCHW"))

    def bn(y, g, b):
        mean = y.mean(axis=(0, 2, 3), keepdims=True)
        var = ((y - mean) ** 2).mean(axis=(0, 2, 3), keepdims=True)
        return ((y - mean) / jnp.sqrt(var + eps) * g.reshape(1, -1, 1, 1)
                + b.reshape(1, -1, 1, 1))

    out = jax.nn.relu(bn(conv(x, p["conv1_w"], stride, 1),
                         p["bn1_gamma"], p["bn1_beta"]))
    out = bn(conv(out, p["conv2_w"], 1, 1), p["bn2_gamma"], p["bn2_beta"])
    if stride != 1 or x.shape[1] != p["conv1_w"].shape[0]:
        short = bn(conv(x, p["sc_conv_w"], stride, 0),
                   p["sc_bn_gamma"], p["sc_bn_beta"])
    else:
        short = x
    return jax.nn.relu(out + short)


def make_params(key, cin, cout, stride):
    ks = jax.random.split(key, 8)
    p = {
        "conv1_w": 0.1 * jax.random.normal(ks[0], (cout, cin, 3, 3), jnp.float32),
        "bn1_gamma": 1.0 + 0.1 * jax.random.normal(ks[1], (cout,), jnp.float32),
        "bn1_beta": 0.1 * jax.random.normal(ks[2], (cout,), jnp.float32),
        "conv2_w": 0.1 * jax.random.normal(ks[3], (cout, cout, 3, 3), jnp.float32),
        "bn2_gamma": 1.0 + 0.1 * jax.random.normal(ks[4], (cout,), jnp.float32),
        "bn2_beta": 0.1 * jax.random.normal(ks[5], (cout,), jnp.float32),
    }
    if stride != 1 or cin != cout:
        p["sc_conv_w"] = 0.1 * jax.random.normal(ks[6], (cout, cin, 1, 1), jnp.float32)
        p["sc_bn_gamma"] = jnp.ones((cout,), jnp.float32)
        p["sc_bn_beta"] = 0.1 * jax.random.normal(ks[7], (cout,), jnp.float32)
    return p


if __name__ == "__main__":
    key = jax.random.PRNGKey(0)
    kx, kp1, kp2 = jax.random.split(key, 3)

    x = jax.random.normal(kx, (2, 4, 16, 16), jnp.float32)

    cases = [
        # (params, stride, expected output shape)
        (make_params(kp1, 4, 4, stride=1), 1, (2, 4, 16, 16)),   # identity shortcut
        (make_params(kp2, 4, 8, stride=2), 2, (2, 8, 8, 8)),     # projection shortcut
    ]

    for p, stride, oshape in cases:
        ref = ref_forward(x, p, stride)
        assert ref.shape == oshape
        # f32 path validates kernel structure tightly; bf16 is the fast MXU
        # path (f32 accumulation + f32 BN stats) with a correspondingly
        # looser absolute tolerance on O(1) outputs.
        for dtype, tol in ((jnp.float32, 1e-2), (jnp.bfloat16, 5e-2)):
            out = jax.block_until_ready(
                residual_block_forward(x, p, stride=stride, compute_dtype=dtype))
            assert out.shape == oshape
            err = float(jnp.max(jnp.abs(out - ref)))
            assert err < tol, (stride, str(dtype), err)

    print("KERNEL_OK")
</pallas_src>

<mosaic_0001>
module attributes {stable_mosaic.version = 11 : i64} {
  func.func @_matmul_stats_kernel(%arg0: i32, %arg1: memref<512x36xf32, #tpu.memory_space<vmem>>, %arg2: memref<36x4xf32, #tpu.memory_space<vmem>>, %arg3: memref<512x4xf32, #tpu.memory_space<vmem>>, %arg4: memref<1x4xf32, #tpu.memory_space<vmem>>, %arg5: memref<1x4xf32, #tpu.memory_space<vmem>>) attributes {dimension_semantics = [#tpu.dimension_semantics<arbitrary>], iteration_bounds = array<i64: 1>, scalar_prefetch = 0 : i64, scratch_operands = 0 : i64, tpu.core_type = #tpu.core_type<tc>, window_params = [{transform_indices = @transform_0, window_bounds = array<i64: 512, 36>}, {pipeline_mode = #tpu.pipeline_mode<synchronous>, transform_indices = @transform_1, window_bounds = array<i64: 36, 4>}, {transform_indices = @transform_2, window_bounds = array<i64: 512, 4>}, {pipeline_mode = #tpu.pipeline_mode<synchronous>, transform_indices = @transform_3, window_bounds = array<i64: 1, 4>}, {pipeline_mode = #tpu.pipeline_mode<synchronous>, transform_indices = @transform_4, window_bounds = array<i64: 1, 4>}]} {
    %c0 = arith.constant 0 : index
    %c0_0 = arith.constant 0 : index
    %0 = vector.load %arg1[%c0, %c0_0] : memref<512x36xf32, #tpu.memory_space<vmem>>, vector<512x36xf32>
    %c0_1 = arith.constant 0 : index
    %c0_2 = arith.constant 0 : index
    %1 = vector.load %arg2[%c0_1, %c0_2] : memref<36x4xf32, #tpu.memory_space<vmem>>, vector<36x4xf32>
    %cst = arith.constant dense<0.000000e+00> : vector<512x4xf32>
    %2 = tpu.matmul %0, %1, %cst {dimension_numbers = #tpu.dot_dimension_numbers<[1], [0], [0], [1], [0, 0, 1, 1], [], []>} : vector<512x36xf32>, vector<36x4xf32>, vector<512x4xf32> -> vector<512x4xf32>
    %c0_3 = arith.constant 0 : index
    %c0_4 = arith.constant 0 : index
    %3 = vector.load %arg3[%c0_3, %c0_4] : memref<512x4xf32, #tpu.memory_space<vmem>>, vector<512x4xf32>
    tpu.vector_store %arg3[%c0_3, %c0_4], %2 {strides = array<i32>} : memref<512x4xf32, #tpu.memory_space<vmem>>, vector<512x4xf32>,
    %c0_i32 = arith.constant 0 : i32
    %4 = arith.cmpi eq, %arg0, %c0_i32 : i32
    %5 = arith.extui %4 : i1 to i32
    %c0_i32_5 = arith.constant 0 : i32
    %6 = arith.cmpi ne, %5, %c0_i32_5 : i32
    scf.if %6 {
      %cst_16 = arith.constant 0.000000e+00 : f32
      %18 = vector.broadcast %cst_16 : f32 to vector<1x4xf32>
      %c0_17 = arith.constant 0 : index
      %c0_18 = arith.constant 0 : index
      %19 = vector.load %arg4[%c0_17, %c0_18] : memref<1x4xf32, #tpu.memory_space<vmem>>, vector<1x4xf32>
      tpu.vector_store %arg4[%c0_17, %c0_18], %18 {strides = array<i32>} : memref<1x4xf32, #tpu.memory_space<vmem>>, vector<1x4xf32>,
      %cst_19 = arith.constant 0.000000e+00 : f32
      %20 = vector.broadcast %cst_19 : f32 to vector<1x4xf32>
      %c0_20 = arith.constant 0 : index
      %c0_21 = arith.constant 0 : index
      %21 = vector.load %arg5[%c0_20, %c0_21] : memref<1x4xf32, #tpu.memory_space<vmem>>, vector<1x4xf32>
      tpu.vector_store %arg5[%c0_20, %c0_21], %20 {strides = array<i32>} : memref<1x4xf32, #tpu.memory_space<vmem>>, vector<1x4xf32>,
    } else {
    }
    %c0_6 = arith.constant 0 : index
    %c0_7 = arith.constant 0 : index
    %7 = vector.load %arg4[%c0_6, %c0_7] : memref<1x4xf32, #tpu.memory_space<vmem>>, vector<1x4xf32>
    %cst_8 = arith.constant dense<0.000000e+00> : vector<4xf32>
    %8 = vector.multi_reduction <add>, %2, %cst_8 [0] : vector<512x4xf32> to vector<4xf32>
    %9 = vector.shape_cast %8 : vector<4xf32> to vector<1x4xf32>
    %10 = arith.addf %7, %9 : vector<1x4xf32>
    %c0_9 = arith.constant 0 : index
    %c0_10 = arith.constant 0 : index
    %11 = vector.load %arg4[%c0_9, %c0_10] : memref<1x4xf32, #tpu.memory_space<vmem>>, vector<1x4xf32>
    tpu.vector_store %arg4[%c0_9, %c0_10], %10 {strides = array<i32>} : memref<1x4xf32, #tpu.memory_space<vmem>>, vector<1x4xf32>,
    %c0_11 = arith.constant 0 : index
    %c0_12 = arith.constant 0 : index
    %12 = vector.load %arg5[%c0_11, %c0_12] : memref<1x4xf32, #tpu.memory_space<vmem>>, vector<1x4xf32>
    %13 = arith.mulf %2, %2 : vector<512x4xf32>
    %cst_13 = arith.constant dense<0.000000e+00> : vector<4xf32>
    %14 = vector.multi_reduction <add>, %13, %cst_13 [0] : vector<512x4xf32> to vector<4xf32>
    %15 = vector.shape_cast %14 : vector<4xf32> to vector<1x4xf32>
    %16 = arith.addf %12, %15 : vector<1x4xf32>
    %c0_14 = arith.constant 0 : index
    %c0_15 = arith.constant 0 : index
    %17 = vector.load %arg5[%c0_14, %c0_15] : memref<1x4xf32, #tpu.memory_space<vmem>>, vector<1x4xf32>
    tpu.vector_store %arg5[%c0_14, %c0_15], %16 {strides = array<i32>} : memref<1x4xf32, #tpu.memory_space<vmem>>, vector<1x4xf32>,
    return
  }
  func.func @transform_0(%arg0: i32) -> (i32, i32) {
    %c0_i32 = arith.constant 0 : i32
    %c0_i32_0 = arith.constant 0 : i32
    return %arg0, %c0_i32 : i32, i32
  }
  func.func @transform_1(%arg0: i32) -> (i32, i32) {
    %c0_i32 = arith.constant 0 : i32
    %c0_i32_0 = arith.constant 0 : i32
    %c0_i32_1 = arith.constant 0 : i32
    return %c0_i32, %c0_i32_0 : i32, i32
  }
  func.func @transform_2(%arg0: i32) -> (i32, i32) {
    %c0_i32 = arith.constant 0 : i32
    %c0_i32_0 = arith.constant 0 : i32
    return %arg0, %c0_i32 : i32, i32
  }
  func.func @transform_3(%arg0: i32) -> (i32, i32) {
    %c0_i32 = arith.constant 0 : i32
    %c0_i32_0 = arith.constant 0 : i32
    %c0_i32_1 = arith.constant 0 : i32
    return %c0_i32, %c0_i32_0 : i32, i32
  }
  func.func @transform_4(%arg0: i32) -> (i32, i32) {
    %c0_i32 = arith.constant 0 : i32
    %c0_i32_0 = arith.constant 0 : i32
    %c0_i32_1 = arith.constant 0 : i32
    return %c0_i32, %c0_i32_0 : i32, i32
  }
}

</mosaic_0001>

<llo_original>
// kernel: tpu_custom_call.1
$region0: #{tpu_custom_call.1}
  #allocation0 [shape = 'u32[]', space=smem, size = 0x4, offset = 0x4, fixed_abs, tag = 'smem constant byte address 0x4 - core index']
  #allocation1 [shape = 'u32[72,128]{1,0:T(1,128)}', space=vmem, size = 0x9000, scoped, tag = 'internal scratch']
  %s0 = inlined_call_operand.vmem [shape: f32[512,36], index: 0, kind: input, shape index: {}]
  %s1 = inlined_call_operand.vmem [shape: f32[36,4], index: 1, kind: input, shape index: {}]
  %s2 = inlined_call_operand.vmem [shape: f32[512,4], index: 2, kind: output, shape index: {0}]
  %s3 = inlined_call_operand.hbm [shape: f32[1,4], index: 3, kind: output, shape index: {1}]
  %s4 = inlined_call_operand.hbm [shape: f32[1,4], index: 4, kind: output, shape index: {2}]
  %5 = xla_tuple %s2, %s3, %s4
  %s6 = sld [smem:[#allocation0]]
  $region38: #{tpu_custom_call.1} parent=0
    _
  %s8 = ssub.s32 1, %s6
  %s9 = scalar_select 0, %s8, %s6
  $region1: #{tpu_custom_call.1} parent=0
    #allocation2 [shape = 'u8[512]{0}', space=vmem, size = 0x400, scoped, tag = 'output window, operand 1, single buffered']
    #allocation3 [shape = 's32[1]{0}', space=sflag, size = 0x4, scoped, tag = 'scoped memory for tpu_custom_call.1']
    #allocation4 [shape = 'u8[512]{0}', space=vmem, size = 0x400, scoped, tag = 'output window, operand 2, single buffered']
    #allocation5 [shape = 's32[1]{0}', space=sflag, size = 0x4, scoped, tag = 'scoped memory for tpu_custom_call.1']
    %10 = vsyncpa [#allocation3], 0
    %11 = vsyncpa [#allocation5], 0
    // Predicated region
    $region2: #{tpu_custom_call.1} parent=1 // pred_check
      _
    $region3: #{tpu_custom_call.1} parent=1 // pred_check_branch
      %13 = sbr.rel (0) target = $region5
    $region4: #{tpu_custom_call.1} parent=1 // pred_region
      _
    $region5: #{tpu_custom_call.1} parent=1 // pred_fallthru
      _
    // Predicated region
    $region6: #{tpu_custom_call.1} parent=1 // pred_check
      _
    $region7: #{tpu_custom_call.1} parent=1 // pred_check_branch
      %15 = sbr.rel (0) target = $region9
    $region8: #{tpu_custom_call.1} parent=1 // pred_region
      _
    $region9: #{tpu_custom_call.1} parent=1 // pred_fallthru
      _
    %v16 = vld [vmem:[%s0] sm:$0xff]
    %v17 = vld [vmem:[%s0 + $0x8] sm:$0xff]
    %v18 = vld [vmem:[%s0 + $0x10] sm:$0xff]
    %v19 = vld [vmem:[%s0 + $0x18] sm:$0xff]
    %v20 = vld [vmem:[%s0 + $0x20] sm:$0xff]
    %v21 = vld [vmem:[%s0 + $0x28] sm:$0xff]
    %v22 = vld [vmem:[%s0 + $0x30] sm:$0xff]
    %v23 = vld [vmem:[%s0 + $0x38] sm:$0xff]
    %v24 = vld [vmem:[%s0 + $0x40] sm:$0xff]
    %v25 = vld [vmem:[%s0 + $0x48] sm:$0xff]
    %v26 = vld [vmem:[%s0 + $0x50] sm:$0xff]
    %v27 = vld [vmem:[%s0 + $0x58] sm:$0xff]
    %v28 = vld [vmem:[%s0 + $0x60] sm:$0xff]
    %v29 = vld [vmem:[%s0 + $0x68] sm:$0xff]
    %v30 = vld [vmem:[%s0 + $0x70] sm:$0xff]
    %v31 = vld [vmem:[%s0 + $0x78] sm:$0xff]
    %v32 = vld [vmem:[%s0 + $0x80] sm:$0xff]
    %v33 = vld [vmem:[%s0 + $0x88] sm:$0xff]
    %v34 = vld [vmem:[%s0 + $0x90] sm:$0xff]
    %v35 = vld [vmem:[%s0 + $0x98] sm:$0xff]
    %v36 = vld [vmem:[%s0 + $0xa0] sm:$0xff]
    %v37 = vld [vmem:[%s0 + $0xa8] sm:$0xff]
    %v38 = vld [vmem:[%s0 + $0xb0] sm:$0xff]
    %v39 = vld [vmem:[%s0 + $0xb8] sm:$0xff]
    %v40 = vld [vmem:[%s0 + $0xc0] sm:$0xff]
    %v41 = vld [vmem:[%s0 + $0xc8] sm:$0xff]
    %v42 = vld [vmem:[%s0 + $0xd0] sm:$0xff]
    %v43 = vld [vmem:[%s0 + $0xd8] sm:$0xff]
    %v44 = vld [vmem:[%s0 + $0xe0] sm:$0xff]
    %v45 = vld [vmem:[%s0 + $0xe8] sm:$0xff]
    %v46 = vld [vmem:[%s0 + $0xf0] sm:$0xff]
    %v47 = vld [vmem:[%s0 + $0xf8] sm:$0xff]
    %v48 = vld [vmem:[%s0 + $0x100] sm:$0xff]
    %v49 = vld [vmem:[%s0 + $0x108] sm:$0xff]
    %v50 = vld [vmem:[%s0 + $0x110] sm:$0xff]
    %v51 = vld [vmem:[%s0 + $0x118] sm:$0xff]
    %v52 = vld [vmem:[%s0 + $0x120] sm:$0xff]
    %v53 = vld [vmem:[%s0 + $0x128] sm:$0xff]
    %v54 = vld [vmem:[%s0 + $0x130] sm:$0xff]
    %v55 = vld [vmem:[%s0 + $0x138] sm:$0xff]
    %v56 = vld [vmem:[%s0 + $0x140] sm:$0xff]
    %v57 = vld [vmem:[%s0 + $0x148] sm:$0xff]
    %v58 = vld [vmem:[%s0 + $0x150] sm:$0xff]
    %v59 = vld [vmem:[%s0 + $0x158] sm:$0xff]
    %v60 = vld [vmem:[%s0 + $0x160] sm:$0xff]
    %v61 = vld [vmem:[%s0 + $0x168] sm:$0xff]
    %v62 = vld [vmem:[%s0 + $0x170] sm:$0xff]
    %v63 = vld [vmem:[%s0 + $0x178] sm:$0xff]
    %v64 = vld [vmem:[%s0 + $0x180] sm:$0xff]
    %v65 = vld [vmem:[%s0 + $0x188] sm:$0xff]
    %v66 = vld [vmem:[%s0 + $0x190] sm:$0xff]
    %v67 = vld [vmem:[%s0 + $0x198] sm:$0xff]
    %v68 = vld [vmem:[%s0 + $0x1a0] sm:$0xff]
    %v69 = vld [vmem:[%s0 + $0x1a8] sm:$0xff]
    %v70 = vld [vmem:[%s0 + $0x1b0] sm:$0xff]
    %v71 = vld [vmem:[%s0 + $0x1b8] sm:$0xff]
    %v72 = vld [vmem:[%s0 + $0x1c0] sm:$0xff]
    %v73 = vld [vmem:[%s0 + $0x1c8] sm:$0xff]
    %v74 = vld [vmem:[%s0 + $0x1d0] sm:$0xff]
    %v75 = vld [vmem:[%s0 + $0x1d8] sm:$0xff]
    %v76 = vld [vmem:[%s0 + $0x1e0] sm:$0xff]
    %v77 = vld [vmem:[%s0 + $0x1e8] sm:$0xff]
    %v78 = vld [vmem:[%s0 + $0x1f0] sm:$0xff]
    %v79 = vld [vmem:[%s0 + $0x1f8] sm:$0xff]
    %v80 = vld [vmem:[%s1] sm:$0xff]
    %v81 = vld [vmem:[%s1 + $0x8] sm:$0xff]
    %v82 = vld [vmem:[%s1 + $0x10] sm:$0xff]
    %v83 = vld [vmem:[%s1 + $0x18] sm:$0xff]
    %v84 = vld [vmem:[%s1 + $0x20] sm:$0xf]
    %vm85 = vcmask 293888
    %v87 = vsel %vm85, %v16, 0
    %v90 = vsel %vm85, %v17, 0
    %v93 = vsel %vm85, %v18, 0
    %v96 = vsel %vm85, %v19, 0
    %v99 = vsel %vm85, %v20, 0
    %v102 = vsel %vm85, %v21, 0
    %v105 = vsel %vm85, %v22, 0
    %v108 = vsel %vm85, %v23, 0
    %v111 = vsel %vm85, %v24, 0
    %v114 = vsel %vm85, %v25, 0
    %v117 = vsel %vm85, %v26, 0
    %v120 = vsel %vm85, %v27, 0
    %v123 = vsel %vm85, %v28, 0
    %v126 = vsel %vm85, %v29, 0
    %v129 = vsel %vm85, %v30, 0
    %v132 = vsel %vm85, %v31, 0
    %v135 = vsel %vm85, %v32, 0
    %v138 = vsel %vm85, %v33, 0
    %v141 = vsel %vm85, %v34, 0
    %v144 = vsel %vm85, %v35, 0
    %v147 = vsel %vm85, %v36, 0
    %v150 = vsel %vm85, %v37, 0
    %v153 = vsel %vm85, %v38, 0
    %v156 = vsel %vm85, %v39, 0
    %v159 = vsel %vm85, %v40, 0
    %v162 = vsel %vm85, %v41, 0
    %v165 = vsel %vm85, %v42, 0
    %v168 = vsel %vm85, %v43, 0
    %v171 = vsel %vm85, %v44, 0
    %v174 = vsel %vm85, %v45, 0
    %v177 = vsel %vm85, %v46, 0
    %v180 = vsel %vm85, %v47, 0
    %v183 = vsel %vm85, %v48, 0
    %v186 = vsel %vm85, %v49, 0
    %v189 = vsel %vm85, %v50, 0
    %v192 = vsel %vm85, %v51, 0
    %v195 = vsel %vm85, %v52, 0
    %v198 = vsel %vm85, %v53, 0
    %v201 = vsel %vm85, %v54, 0
    %v204 = vsel %vm85, %v55, 0
    %v207 = vsel %vm85, %v56, 0
    %v210 = vsel %vm85, %v57, 0
    %v213 = vsel %vm85, %v58, 0
    %v216 = vsel %vm85, %v59, 0
    %v219 = vsel %vm85, %v60, 0
    %v222 = vsel %vm85, %v61, 0
    %v225 = vsel %vm85, %v62, 0
    %v228 = vsel %vm85, %v63, 0
    %v231 = vsel %vm85, %v64, 0
    %v234 = vsel %vm85, %v65, 0
    %v237 = vsel %vm85, %v66, 0
    %v240 = vsel %vm85, %v67, 0
    %v243 = vsel %vm85, %v68, 0
    %v246 = vsel %vm85, %v69, 0
    %v249 = vsel %vm85, %v70, 0
    %v252 = vsel %vm85, %v71, 0
    %v255 = vsel %vm85, %v72, 0
    %v258 = vsel %vm85, %v73, 0
    %v261 = vsel %vm85, %v74, 0
    %v264 = vsel %vm85, %v75, 0
    %v267 = vsel %vm85, %v76, 0
    %v270 = vsel %vm85, %v77, 0
    %v273 = vsel %vm85, %v78, 0
    %v276 = vsel %vm85, %v79, 0
    %vm278 = vcmask 1043456
    %v280 = vsel %vm278, %v84, 0
    %282 = vmatpush.msra.mxu0 0.0
    %283 = vmatpush.msra.mxu0 0.0
    %284 = vmatpush.msra.mxu0 0.0
    %285 = vmatpush.msra.mxu0 0.0
    %286 = vmatpush.msra.mxu0 0.0
    %287 = vmatpush.msra.mxu0 0.0
    %288 = vmatpush.msra.mxu0 0.0
    %289 = vmatpush.msra.mxu0 0.0
    %290 = vmatpush.msra.mxu0 0.0
    %291 = vmatpush.msra.mxu0 0.0
    %292 = vmatpush.msra.mxu0 0.0
    %293 = vmatpush.msra.mxu0 %v280
    %294 = vmatpush.msra.mxu0 %v83
    %295 = vmatpush.msra.mxu0 %v82
    %296 = vmatpush.msra.mxu0 %v81
    %297 = vmatpush.msra.mxu0 %v80
    %298 = vmatmul.f32.gmra.mxu0 %v87
    %v299 = vpop.f32.mrf.mxu0
    %v300 = vadd.f32 0.0, %v299
    %301 = vmatmul.f32.gmra.mxu0 %v90
    %v302 = vpop.f32.mrf.mxu0
    %v303 = vadd.f32 0.0, %v302
    %304 = vmatmul.f32.gmra.mxu0 %v93
    %v305 = vpop.f32.mrf.mxu0
    %v306 = vadd.f32 0.0, %v305
    %307 = vmatmul.f32.gmra.mxu0 %v96
    %v308 = vpop.f32.mrf.mxu0
    %v309 = vadd.f32 0.0, %v308
    %310 = vmatmul.f32.gmra.mxu0 %v99
    %v311 = vpop.f32.mrf.mxu0
    %v312 = vadd.f32 0.0, %v311
    %313 = vmatmul.f32.gmra.mxu0 %v102
    %v314 = vpop.f32.mrf.mxu0
    %v315 = vadd.f32 0.0, %v314
    %316 = vmatmul.f32.gmra.mxu0 %v105
    %v317 = vpop.f32.mrf.mxu0
    %v318 = vadd.f32 0.0, %v317
    %319 = vmatmul.f32.gmra.mxu0 %v108
    %v320 = vpop.f32.mrf.mxu0
    %v321 = vadd.f32 0.0, %v320
    %322 = vmatmul.f32.gmra.mxu0 %v111
    %v323 = vpop.f32.mrf.mxu0
    %v324 = vadd.f32 0.0, %v323
    %325 = vmatmul.f32.gmra.mxu0 %v114
    %v326 = vpop.f32.mrf.mxu0
    %v327 = vadd.f32 0.0, %v326
    %328 = vmatmul.f32.gmra.mxu0 %v117
    %v329 = vpop.f32.mrf.mxu0
    %v330 = vadd.f32 0.0, %v329
    %331 = vmatmul.f32.gmra.mxu0 %v120
    %v332 = vpop.f32.mrf.mxu0
    %v333 = vadd.f32 0.0, %v332
    %334 = vmatmul.f32.gmra.mxu0 %v123
    %v335 = vpop.f32.mrf.mxu0
    %v336 = vadd.f32 0.0, %v335
    %337 = vmatmul.f32.gmra.mxu0 %v126
    %v338 = vpop.f32.mrf.mxu0
    %v339 = vadd.f32 0.0, %v338
    %340 = vmatmul.f32.gmra.mxu0 %v129
    %v341 = vpop.f32.mrf.mxu0
    %v342 = vadd.f32 0.0, %v341
    %343 = vmatmul.f32.gmra.mxu0 %v132
    %v344 = vpop.f32.mrf.mxu0
    %v345 = vadd.f32 0.0, %v344
    %346 = vmatmul.f32.gmra.mxu0 %v135
    %v347 = vpop.f32.mrf.mxu0
    %v348 = vadd.f32 0.0, %v347
    %349 = vmatmul.f32.gmra.mxu0 %v138
    %v350 = vpop.f32.mrf.mxu0
    %v351 = vadd.f32 0.0, %v350
    %352 = vmatmul.f32.gmra.mxu0 %v141
    %v353 = vpop.f32.mrf.mxu0
    %v354 = vadd.f32 0.0, %v353
    %355 = vmatmul.f32.gmra.mxu0 %v144
    %v356 = vpop.f32.mrf.mxu0
    %v357 = vadd.f32 0.0, %v356
    %358 = vmatmul.f32.gmra.mxu0 %v147
    %v359 = vpop.f32.mrf.mxu0
    %v360 = vadd.f32 0.0, %v359
    %361 = vmatmul.f32.gmra.mxu0 %v150
    %v362 = vpop.f32.mrf.mxu0
    %v363 = vadd.f32 0.0, %v362
    %364 = vmatmul.f32.gmra.mxu0 %v153
    %v365 = vpop.f32.mrf.mxu0
    %v366 = vadd.f32 0.0, %v365
    %367 = vmatmul.f32.gmra.mxu0 %v156
    %v368 = vpop.f32.mrf.mxu0
    %v369 = vadd.f32 0.0, %v368
    %370 = vmatmul.f32.gmra.mxu0 %v159
    %v371 = vpop.f32.mrf.mxu0
    %v372 = vadd.f32 0.0, %v371
    %373 = vmatmul.f32.gmra.mxu0 %v162
    %v374 = vpop.f32.mrf.mxu0
    %v375 = vadd.f32 0.0, %v374
    %376 = vmatmul.f32.gmra.mxu0 %v165
    %v377 = vpop.f32.mrf.mxu0
    %v378 = vadd.f32 0.0, %v377
    %379 = vmatmul.f32.gmra.mxu0 %v168
    %v380 = vpop.f32.mrf.mxu0
    %v381 = vadd.f32 0.0, %v380
    %382 = vmatmul.f32.gmra.mxu0 %v171
    %v383 = vpop.f32.mrf.mxu0
    %v384 = vadd.f32 0.0, %v383
    %385 = vmatmul.f32.gmra.mxu0 %v174
    %v386 = vpop.f32.mrf.mxu0
    %v387 = vadd.f32 0.0, %v386
    %388 = vmatmul.f32.gmra.mxu0 %v177
    %v389 = vpop.f32.mrf.mxu0
    %v390 = vadd.f32 0.0, %v389
    %391 = vmatmul.f32.gmra.mxu0 %v180
    %v392 = vpop.f32.mrf.mxu0
    %v393 = vadd.f32 0.0, %v392
    %394 = vmatmul.f32.gmra.mxu0 %v183
    %v395 = vpop.f32.mrf.mxu0
    %v396 = vadd.f32 0.0, %v395
    %397 = vmatmul.f32.gmra.mxu0 %v186
    %v398 = vpop.f32.mrf.mxu0
    %v399 = vadd.f32 0.0, %v398
    %400 = vmatmul.f32.gmra.mxu0 %v189
    %v401 = vpop.f32.mrf.mxu0
    %v402 = vadd.f32 0.0, %v401
    %403 = vmatmul.f32.gmra.mxu0 %v192
    %v404 = vpop.f32.mrf.mxu0
    %v405 = vadd.f32 0.0, %v404
    %406 = vmatmul.f32.gmra.mxu0 %v195
    %v407 = vpop.f32.mrf.mxu0
    %v408 = vadd.f32 0.0, %v407
    %409 = vmatmul.f32.gmra.mxu0 %v198
    %v410 = vpop.f32.mrf.mxu0
    %v411 = vadd.f32 0.0, %v410
    %412 = vmatmul.f32.gmra.mxu0 %v201
    %v413 = vpop.f32.mrf.mxu0
    %v414 = vadd.f32 0.0, %v413
    %415 = vmatmul.f32.gmra.mxu0 %v204
    %v416 = vpop.f32.mrf.mxu0
    %v417 = vadd.f32 0.0, %v416
    %418 = vmatmul.f32.gmra.mxu0 %v207
    %v419 = vpop.f32.mrf.mxu0
    %v420 = vadd.f32 0.0, %v419
    %421 = vmatmul.f32.gmra.mxu0 %v210
    %v422 = vpop.f32.mrf.mxu0
    %v423 = vadd.f32 0.0, %v422
    %424 = vmatmul.f32.gmra.mxu0 %v213
    %v425 = vpop.f32.mrf.mxu0
    %v426 = vadd.f32 0.0, %v425
    %427 = vmatmul.f32.gmra.mxu0 %v216
    %v428 = vpop.f32.mrf.mxu0
    %v429 = vadd.f32 0.0, %v428
    %430 = vmatmul.f32.gmra.mxu0 %v219
    %v431 = vpop.f32.mrf.mxu0
    %v432 = vadd.f32 0.0, %v431
    %433 = vmatmul.f32.gmra.mxu0 %v222
    %v434 = vpop.f32.mrf.mxu0
    %v435 = vadd.f32 0.0, %v434
    %436 = vmatmul.f32.gmra.mxu0 %v225
    %v437 = vpop.f32.mrf.mxu0
    %v438 = vadd.f32 0.0, %v437
    %439 = vmatmul.f32.gmra.mxu0 %v228
    %v440 = vpop.f32.mrf.mxu0
    %v441 = vadd.f32 0.0, %v440
    %442 = vmatmul.f32.gmra.mxu0 %v231
    %v443 = vpop.f32.mrf.mxu0
    %v444 = vadd.f32 0.0, %v443
    %445 = vmatmul.f32.gmra.mxu0 %v234
    %v446 = vpop.f32.mrf.mxu0
    %v447 = vadd.f32 0.0, %v446
    %448 = vmatmul.f32.gmra.mxu0 %v237
    %v449 = vpop.f32.mrf.mxu0
    %v450 = vadd.f32 0.0, %v449
    %451 = vmatmul.f32.gmra.mxu0 %v240
    %v452 = vpop.f32.mrf.mxu0
    %v453 = vadd.f32 0.0, %v452
    %454 = vmatmul.f32.gmra.mxu0 %v243
    %v455 = vpop.f32.mrf.mxu0
    %v456 = vadd.f32 0.0, %v455
    %457 = vmatmul.f32.gmra.mxu0 %v246
    %v458 = vpop.f32.mrf.mxu0
    %v459 = vadd.f32 0.0, %v458
    %460 = vmatmul.f32.gmra.mxu0 %v249
    %v461 = vpop.f32.mrf.mxu0
    %v462 = vadd.f32 0.0, %v461
    %463 = vmatmul.f32.gmra.mxu0 %v252
    %v464 = vpop.f32.mrf.mxu0
    %v465 = vadd.f32 0.0, %v464
    %466 = vmatmul.f32.gmra.mxu0 %v255
    %v467 = vpop.f32.mrf.mxu0
    %v468 = vadd.f32 0.0, %v467
    %469 = vmatmul.f32.gmra.mxu0 %v258
    %v470 = vpop.f32.mrf.mxu0
    %v471 = vadd.f32 0.0, %v470
    %472 = vmatmul.f32.gmra.mxu0 %v261
    %v473 = vpop.f32.mrf.mxu0
    %v474 = vadd.f32 0.0, %v473
    %475 = vmatmul.f32.gmra.mxu0 %v264
    %v476 = vpop.f32.mrf.mxu0
    %v477 = vadd.f32 0.0, %v476
    %478 = vmatmul.f32.gmra.mxu0 %v267
    %v479 = vpop.f32.mrf.mxu0
    %v480 = vadd.f32 0.0, %v479
    %481 = vmatmul.f32.gmra.mxu0 %v270
    %v482 = vpop.f32.mrf.mxu0
    %v483 = vadd.f32 0.0, %v482
    %484 = vmatmul.f32.gmra.mxu0 %v273
    %v485 = vpop.f32.mrf.mxu0
    %v486 = vadd.f32 0.0, %v485
    %487 = vmatmul.f32.gmra.mxu0 %v276
    %v488 = vpop.f32.mrf.mxu0
    %v489 = vadd.f32 0.0, %v488
    %490 = vdwg.mxu0
    %vm491 = vcmask 31744
    %492 = vst.msk [vmem:[%s2] sm:$0xff] %vm491, %v300
    %493 = vst.msk [vmem:[%s2 + $0x8] sm:$0xff] %vm491, %v303
    %494 = vst.msk [vmem:[%s2 + $0x10] sm:$0xff] %vm491, %v306
    %495 = vst.msk [vmem:[%s2 + $0x18] sm:$0xff] %vm491, %v309
    %496 = vst.msk [vmem:[%s2 + $0x20] sm:$0xff] %vm491, %v312
    %497 = vst.msk [vmem:[%s2 + $0x28] sm:$0xff] %vm491, %v315
    %498 = vst.msk [vmem:[%s2 + $0x30] sm:$0xff] %vm491, %v318
    %499 = vst.msk [vmem:[%s2 + $0x38] sm:$0xff] %vm491, %v321
    %500 = vst.msk [vmem:[%s2 + $0x40] sm:$0xff] %vm491, %v324
    %501 = vst.msk [vmem:[%s2 + $0x48] sm:$0xff] %vm491, %v327
    %502 = vst.msk [vmem:[%s2 + $0x50] sm:$0xff] %vm491, %v330
    %503 = vst.msk [vmem:[%s2 + $0x58] sm:$0xff] %vm491, %v333
    %504 = vst.msk [vmem:[%s2 + $0x60] sm:$0xff] %vm491, %v336
    %505 = vst.msk [vmem:[%s2 + $0x68] sm:$0xff] %vm491, %v339
    %506 = vst.msk [vmem:[%s2 + $0x70] sm:$0xff] %vm491, %v342
    %507 = vst.msk [vmem:[%s2 + $0x78] sm:$0xff] %vm491, %v345
    %508 = vst.msk [vmem:[%s2 + $0x80] sm:$0xff] %vm491, %v348
    %509 = vst.msk [vmem:[%s2 + $0x88] sm:$0xff] %vm491, %v351
    %510 = vst.msk [vmem:[%s2 + $0x90] sm:$0xff] %vm491, %v354
    %511 = vst.msk [vmem:[%s2 + $0x98] sm:$0xff] %vm491, %v357
    %512 = vst.msk [vmem:[%s2 + $0xa0] sm:$0xff] %vm491, %v360
    %513 = vst.msk [vmem:[%s2 + $0xa8] sm:$0xff] %vm491, %v363
    %514 = vst.msk [vmem:[%s2 + $0xb0] sm:$0xff] %vm491, %v366
    %515 = vst.msk [vmem:[%s2 + $0xb8] sm:$0xff] %vm491, %v369
    %516 = vst.msk [vmem:[%s2 + $0xc0] sm:$0xff] %vm491, %v372
    %517 = vst.msk [vmem:[%s2 + $0xc8] sm:$0xff] %vm491, %v375
    %518 = vst.msk [vmem:[%s2 + $0xd0] sm:$0xff] %vm491, %v378
    %519 = vst.msk [vmem:[%s2 + $0xd8] sm:$0xff] %vm491, %v381
    %520 = vst.msk [vmem:[%s2 + $0xe0] sm:$0xff] %vm491, %v384
    %521 = vst.msk [vmem:[%s2 + $0xe8] sm:$0xff] %vm491, %v387
    %522 = vst.msk [vmem:[%s2 + $0xf0] sm:$0xff] %vm491, %v390
    %523 = vst.msk [vmem:[%s2 + $0xf8] sm:$0xff] %vm491, %v393
    %524 = vst.msk [vmem:[%s2 + $0x100] sm:$0xff] %vm491, %v396
    %525 = vst.msk [vmem:[%s2 + $0x108] sm:$0xff] %vm491, %v399
    %526 = vst.msk [vmem:[%s2 + $0x110] sm:$0xff] %vm491, %v402
    %527 = vst.msk [vmem:[%s2 + $0x118] sm:$0xff] %vm491, %v405
    %528 = vst.msk [vmem:[%s2 + $0x120] sm:$0xff] %vm491, %v408
    %529 = vst.msk [vmem:[%s2 + $0x128] sm:$0xff] %vm491, %v411
    %530 = vst.msk [vmem:[%s2 + $0x130] sm:$0xff] %vm491, %v414
    %531 = vst.msk [vmem:[%s2 + $0x138] sm:$0xff] %vm491, %v417
    %532 = vst.msk [vmem:[%s2 + $0x140] sm:$0xff] %vm491, %v420
    %533 = vst.msk [vmem:[%s2 + $0x148] sm:$0xff] %vm491, %v423
    %534 = vst.msk [vmem:[%s2 + $0x150] sm:$0xff] %vm491, %v426
    %535 = vst.msk [vmem:[%s2 + $0x158] sm:$0xff] %vm491, %v429
    %536 = vst.msk [vmem:[%s2 + $0x160] sm:$0xff] %vm491, %v432
    %537 = vst.msk [vmem:[%s2 + $0x168] sm:$0xff] %vm491, %v435
    %538 = vst.msk [vmem:[%s2 + $0x170] sm:$0xff] %vm491, %v438
    %539 = vst.msk [vmem:[%s2 + $0x178] sm:$0xff] %vm491, %v441
    %540 = vst.msk [vmem:[%s2 + $0x180] sm:$0xff] %vm491, %v444
    %541 = vst.msk [vmem:[%s2 + $0x188] sm:$0xff] %vm491, %v447
    %542 = vst.msk [vmem:[%s2 + $0x190] sm:$0xff] %vm491, %v450
    %543 = vst.msk [vmem:[%s2 + $0x198] sm:$0xff] %vm491, %v453
    %544 = vst.msk [vmem:[%s2 + $0x1a0] sm:$0xff] %vm491, %v456
    %545 = vst.msk [vmem:[%s2 + $0x1a8] sm:$0xff] %vm491, %v459
    %546 = vst.msk [vmem:[%s2 + $0x1b0] sm:$0xff] %vm491, %v462
    %547 = vst.msk [vmem:[%s2 + $0x1b8] sm:$0xff] %vm491, %v465
    %548 = vst.msk [vmem:[%s2 + $0x1c0] sm:$0xff] %vm491, %v468
    %549 = vst.msk [vmem:[%s2 + $0x1c8] sm:$0xff] %vm491, %v471
    %550 = vst.msk [vmem:[%s2 + $0x1d0] sm:$0xff] %vm491, %v474
    %551 = vst.msk [vmem:[%s2 + $0x1d8] sm:$0xff] %vm491, %v477
    %552 = vst.msk [vmem:[%s2 + $0x1e0] sm:$0xff] %vm491, %v480
    %553 = vst.msk [vmem:[%s2 + $0x1e8] sm:$0xff] %vm491, %v483
    %554 = vst.msk [vmem:[%s2 + $0x1f0] sm:$0xff] %vm491, %v486
    %555 = vst.msk [vmem:[%s2 + $0x1f8] sm:$0xff] %vm491, %v489
    %p556 = scmp.eq.s32.totalorder 0, 0
    // Predicated region
    $region10: #{tpu_custom_call.1} parent=1 // pred_check
      %p557 = pneg %p556
    $region11: #{tpu_custom_call.1} parent=1 // pred_check_branch
      %559 = sbr.rel (%p557) target = $region13
    $region12: #{tpu_custom_call.1} parent=1 // pred_region
      %vm560 = vcmask 24576
      %561 = vst.msk [vmem:[#allocation2] sm:$0x1] %vm560, 0.0
      %562 = vst.msk [vmem:[#allocation4] sm:$0x1] %vm560, 0.0
    $region13: #{tpu_custom_call.1} parent=1 // pred_fallthru
      _
    %v563 = vld [vmem:[#allocation2] sm:$0x1]
    %v564 = vsel %vm491, %v300, 0.0
    %v565 = vsel %vm491, %v303, 0.0
    %v566 = vadd.f32 %v564, %v565
    %v567 = vsel %vm491, %v306, 0.0
    %v568 = vadd.f32 %v566, %v567
    %v569 = vsel %vm491, %v309, 0.0
    %v570 = vadd.f32 %v568, %v569
    %v571 = vsel %vm491, %v312, 0.0
    %v572 = vadd.f32 %v570, %v571
    %v573 = vsel %vm491, %v315, 0.0
    %v574 = vadd.f32 %v572, %v573
    %v575 = vsel %vm491, %v318, 0.0
    %v576 = vadd.f32 %v574, %v575
    %v577 = vsel %vm491, %v321, 0.0
    %v578 = vadd.f32 %v576, %v577
    %v579 = vsel %vm491, %v324, 0.0
    %v580 = vadd.f32 %v578, %v579
    %v581 = vsel %vm491, %v327, 0.0
    %v582 = vadd.f32 %v580, %v581
    %v583 = vsel %vm491, %v330, 0.0
    %v584 = vadd.f32 %v582, %v583
    %v585 = vsel %vm491, %v333, 0.0
    %v586 = vadd.f32 %v584, %v585
    %v587 = vsel %vm491, %v336, 0.0
    %v588 = vadd.f32 %v586, %v587
    %v589 = vsel %vm491, %v339, 0.0
    %v590 = vadd.f32 %v588, %v589
    %v591 = vsel %vm491, %v342, 0.0
    %v592 = vadd.f32 %v590, %v591
    %v593 = vsel %vm491, %v345, 0.0
    %v594 = vadd.f32 %v592, %v593
    %v595 = vsel %vm491, %v348, 0.0
    %v596 = vadd.f32 %v594, %v595
    %v597 = vsel %vm491, %v351, 0.0
    %v598 = vadd.f32 %v596, %v597
    %v599 = vsel %vm491, %v354, 0.0
    %v600 = vadd.f32 %v598, %v599
    %v601 = vsel %vm491, %v357, 0.0
    %v602 = vadd.f32 %v600, %v601
    %v603 = vsel %vm491, %v360, 0.0
    %v604 = vadd.f32 %v602, %v603
    %v605 = vsel %vm491, %v363, 0.0
    %v606 = vadd.f32 %v604, %v605
    %v607 = vsel %vm491, %v366, 0.0
    %v608 = vadd.f32 %v606, %v607
    %v609 = vsel %vm491, %v369, 0.0
    %v610 = vadd.f32 %v608, %v609
    %v611 = vsel %vm491, %v372, 0.0
    %v612 = vadd.f32 %v610, %v611
    %v613 = vsel %vm491, %v375, 0.0
    %v614 = vadd.f32 %v612, %v613
    %v615 = vsel %vm491, %v378, 0.0
    %v616 = vadd.f32 %v614, %v615
    %v617 = vsel %vm491, %v381, 0.0
    %v618 = vadd.f32 %v616, %v617
    %v619 = vsel %vm491, %v384, 0.0
    %v620 = vadd.f32 %v618, %v619
    %v621 = vsel %vm491, %v387, 0.0
    %v622 = vadd.f32 %v620, %v621
    %v623 = vsel %vm491, %v390, 0.0
    %v624 = vadd.f32 %v622, %v623
    %v625 = vsel %vm491, %v393, 0.0
    %v626 = vadd.f32 %v624, %v625
    %v627 = vsel %vm491, %v396, 0.0
    %v628 = vadd.f32 %v626, %v627
    %v629 = vsel %vm491, %v399, 0.0
    %v630 = vadd.f32 %v628, %v629
    %v631 = vsel %vm491, %v402, 0.0
    %v632 = vadd.f32 %v630, %v631
    %v633 = vsel %vm491, %v405, 0.0
    %v634 = vadd.f32 %v632, %v633
    %v635 = vsel %vm491, %v408, 0.0
    %v636 = vadd.f32 %v634, %v635
    %v637 = vsel %vm491, %v411, 0.0
    %v638 = vadd.f32 %v636, %v637
    %v639 = vsel %vm491, %v414, 0.0
    %v640 = vadd.f32 %v638, %v639
    %v641 = vsel %vm491, %v417, 0.0
    %v642 = vadd.f32 %v640, %v641
    %v643 = vsel %vm491, %v420, 0.0
    %v644 = vadd.f32 %v642, %v643
    %v645 = vsel %vm491, %v423, 0.0
    %v646 = vadd.f32 %v644, %v645
    %v647 = vsel %vm491, %v426, 0.0
    %v648 = vadd.f32 %v646, %v647
    %v649 = vsel %vm491, %v429, 0.0
    %v650 = vadd.f32 %v648, %v649
    %v651 = vsel %vm491, %v432, 0.0
    %v652 = vadd.f32 %v650, %v651
    %v653 = vsel %vm491, %v435, 0.0
    %v654 = vadd.f32 %v652, %v653
    %v655 = vsel %vm491, %v438, 0.0
    %v656 = vadd.f32 %v654, %v655
    %v657 = vsel %vm491, %v441, 0.0
    %v658 = vadd.f32 %v656, %v657
    %v659 = vsel %vm491, %v444, 0.0
    %v660 = vadd.f32 %v658, %v659
    %v661 = vsel %vm491, %v447, 0.0
    %v662 = vadd.f32 %v660, %v661
    %v663 = vsel %vm491, %v450, 0.0
    %v664 = vadd.f32 %v662, %v663
    %v665 = vsel %vm491, %v453, 0.0
    %v666 = vadd.f32 %v664, %v665
    %v667 = vsel %vm491, %v456, 0.0
    %v668 = vadd.f32 %v666, %v667
    %v669 = vsel %vm491, %v459, 0.0
    %v670 = vadd.f32 %v668, %v669
    %v671 = vsel %vm491, %v462, 0.0
    %v672 = vadd.f32 %v670, %v671
    %v673 = vsel %vm491, %v465, 0.0
    %v674 = vadd.f32 %v672, %v673
    %v675 = vsel %vm491, %v468, 0.0
    %v676 = vadd.f32 %v674, %v675
    %v677 = vsel %vm491, %v471, 0.0
    %v678 = vadd.f32 %v676, %v677
    %v679 = vsel %vm491, %v474, 0.0
    %v680 = vadd.f32 %v678, %v679
    %v681 = vsel %vm491, %v477, 0.0
    %v682 = vadd.f32 %v680, %v681
    %v683 = vsel %vm491, %v480, 0.0
    %v684 = vadd.f32 %v682, %v683
    %v685 = vsel %vm491, %v483, 0.0
    %v686 = vadd.f32 %v684, %v685
    %v687 = vsel %vm491, %v486, 0.0
    %v688 = vadd.f32 %v686, %v687
    %v689 = vsel %vm491, %v489, 0.0
    %v690 = vadd.f32 %v688, %v689
    %v691 = vrot.slane %v690, 4
    %v692 = vadd.f32 %v690, %v691
    %v693 = vrot.slane %v692, 2
    %v694 = vadd.f32 %v692, %v693
    %v695 = vrot.slane %v694, 1
    %v696 = vadd.f32 %v694, %v695
    %v697 = vadd.f32 %v563, %v696
    %vm698 = vcmask 24576
    %699 = vst.msk [vmem:[#allocation2] sm:$0x1] %vm698, %v697
    %v700 = vld [vmem:[#allocation4] sm:$0x1]
    %v701 = vmul.f32 %v300, %v300
    %v702 = vmul.f32 %v303, %v303
    %v703 = vmul.f32 %v306, %v306
    %v704 = vmul.f32 %v309, %v309
    %v705 = vmul.f32 %v312, %v312
    %v706 = vmul.f32 %v315, %v315
    %v707 = vmul.f32 %v318, %v318
    %v708 = vmul.f32 %v321, %v321
    %v709 = vmul.f32 %v324, %v324
    %v710 = vmul.f32 %v327, %v327
    %v711 = vmul.f32 %v330, %v330
    %v712 = vmul.f32 %v333, %v333
    %v713 = vmul.f32 %v336, %v336
    %v714 = vmul.f32 %v339, %v339
    %v715 = vmul.f32 %v342, %v342
    %v716 = vmul.f32 %v345, %v345
    %v717 = vmul.f32 %v348, %v348
    %v718 = vmul.f32 %v351, %v351
    %v719 = vmul.f32 %v354, %v354
    %v720 = vmul.f32 %v357, %v357
    %v721 = vmul.f32 %v360, %v360
    %v722 = vmul.f32 %v363, %v363
    %v723 = vmul.f32 %v366, %v366
    %v724 = vmul.f32 %v369, %v369
    %v725 = vmul.f32 %v372, %v372
    %v726 = vmul.f32 %v375, %v375
    %v727 = vmul.f32 %v378, %v378
    %v728 = vmul.f32 %v381, %v381
    %v729 = vmul.f32 %v384, %v384
    %v730 = vmul.f32 %v387, %v387
    %v731 = vmul.f32 %v390, %v390
    %v732 = vmul.f32 %v393, %v393
    %v733 = vmul.f32 %v396, %v396
    %v734 = vmul.f32 %v399, %v399
    %v735 = vmul.f32 %v402, %v402
    %v736 = vmul.f32 %v405, %v405
    %v737 = vmul.f32 %v408, %v408
    %v738 = vmul.f32 %v411, %v411
    %v739 = vmul.f32 %v414, %v414
    %v740 = vmul.f32 %v417, %v417
    %v741 = vmul.f32 %v420, %v420
    %v742 = vmul.f32 %v423, %v423
    %v743 = vmul.f32 %v426, %v426
    %v744 = vmul.f32 %v429, %v429
    %v745 = vmul.f32 %v432, %v432
    %v746 = vmul.f32 %v435, %v435
    %v747 = vmul.f32 %v438, %v438
    %v748 = vmul.f32 %v441, %v441
    %v749 = vmul.f32 %v444, %v444
    %v750 = vmul.f32 %v447, %v447
    %v751 = vmul.f32 %v450, %v450
    %v752 = vmul.f32 %v453, %v453
    %v753 = vmul.f32 %v456, %v456
    %v754 = vmul.f32 %v459, %v459
    %v755 = vmul.f32 %v462, %v462
    %v756 = vmul.f32 %v465, %v465
    %v757 = vmul.f32 %v468, %v468
    %v758 = vmul.f32 %v471, %v471
    %v759 = vmul.f32 %v474, %v474
    %v760 = vmul.f32 %v477, %v477
    %v761 = vmul.f32 %v480, %v480
    %v762 = vmul.f32 %v483, %v483
    %v763 = vmul.f32 %v486, %v486
    %v764 = vmul.f32 %v489, %v489
    %v765 = vsel %vm491, %v701, 0.0
    %v766 = vsel %vm491, %v702, 0.0
    %v767 = vadd.f32 %v765, %v766
    %v768 = vsel %vm491, %v703, 0.0
    %v769 = vadd.f32 %v767, %v768
    %v770 = vsel %vm491, %v704, 0.0
    %v771 = vadd.f32 %v769, %v770
    %v772 = vsel %vm491, %v705, 0.0
    %v773 = vadd.f32 %v771, %v772
    %v774 = vsel %vm491, %v706, 0.0
    %v775 = vadd.f32 %v773, %v774
    %v776 = vsel %vm491, %v707, 0.0
    %v777 = vadd.f32 %v775, %v776
    %v778 = vsel %vm491, %v708, 0.0
    %v779 = vadd.f32 %v777, %v778
    %v780 = vsel %vm491, %v709, 0.0
    %v781 = vadd.f32 %v779, %v780
    %v782 = vsel %vm491, %v710, 0.0
    %v783 = vadd.f32 %v781, %v782
    %v784 = vsel %vm491, %v711, 0.0
    %v785 = vadd.f32 %v783, %v784
    %v786 = vsel %vm491, %v712, 0.0
    %v787 = vadd.f32 %v785, %v786
    %v788 = vsel %vm491, %v713, 0.0
    %v789 = vadd.f32 %v787, %v788
    %v790 = vsel %vm491, %v714, 0.0
    %v791 = vadd.f32 %v789, %v790
    %v792 = vsel %vm491, %v715, 0.0
    %v793 = vadd.f32 %v791, %v792
    %v794 = vsel %vm491, %v716, 0.0
    %v795 = vadd.f32 %v793, %v794
    %v796 = vsel %vm491, %v717, 0.0
    %v797 = vadd.f32 %v795, %v796
    %v798 = vsel %vm491, %v718, 0.0
    %v799 = vadd.f32 %v797, %v798
    %v800 = vsel %vm491, %v719, 0.0
    %v801 = vadd.f32 %v799, %v800
    %v802 = vsel %vm491, %v720, 0.0
    %v803 = vadd.f32 %v801, %v802
    %v804 = vsel %vm491, %v721, 0.0
    %v805 = vadd.f32 %v803, %v804
    %v806 = vsel %vm491, %v722, 0.0
    %v807 = vadd.f32 %v805, %v806
    %v808 = vsel %vm491, %v723, 0.0
    %v809 = vadd.f32 %v807, %v808
    %v810 = vsel %vm491, %v724, 0.0
    %v811 = vadd.f32 %v809, %v810
    %v812 = vsel %vm491, %v725, 0.0
    %v813 = vadd.f32 %v811, %v812
    %v814 = vsel %vm491, %v726, 0.0
    %v815 = vadd.f32 %v813, %v814
    %v816 = vsel %vm491, %v727, 0.0
    %v817 = vadd.f32 %v815, %v816
    %v818 = vsel %vm491, %v728, 0.0
    %v819 = vadd.f32 %v817, %v818
    %v820 = vsel %vm491, %v729, 0.0
    %v821 = vadd.f32 %v819, %v820
    %v822 = vsel %vm491, %v730, 0.0
    %v823 = vadd.f32 %v821, %v822
    %v824 = vsel %vm491, %v731, 0.0
    %v825 = vadd.f32 %v823, %v824
    %v826 = vsel %vm491, %v732, 0.0
    %v827 = vadd.f32 %v825, %v826
    %v828 = vsel %vm491, %v733, 0.0
    %v829 = vadd.f32 %v827, %v828
    %v830 = vsel %vm491, %v734, 0.0
    %v831 = vadd.f32 %v829, %v830
    %v832 = vsel %vm491, %v735, 0.0
    %v833 = vadd.f32 %v831, %v832
    %v834 = vsel %vm491, %v736, 0.0
    %v835 = vadd.f32 %v833, %v834
    %v836 = vsel %vm491, %v737, 0.0
    %v837 = vadd.f32 %v835, %v836
    %v838 = vsel %vm491, %v738, 0.0
    %v839 = vadd.f32 %v837, %v838
    %v840 = vsel %vm491, %v739, 0.0
    %v841 = vadd.f32 %v839, %v840
    %v842 = vsel %vm491, %v740, 0.0
    %v843 = vadd.f32 %v841, %v842
    %v844 = vsel %vm491, %v741, 0.0
    %v845 = vadd.f32 %v843, %v844
    %v846 = vsel %vm491, %v742, 0.0
    %v847 = vadd.f32 %v845, %v846
    %v848 = vsel %vm491, %v743, 0.0
    %v849 = vadd.f32 %v847, %v848
    %v850 = vsel %vm491, %v744, 0.0
    %v851 = vadd.f32 %v849, %v850
    %v852 = vsel %vm491, %v745, 0.0
    %v853 = vadd.f32 %v851, %v852
    %v854 = vsel %vm491, %v746, 0.0
    %v855 = vadd.f32 %v853, %v854
    %v856 = vsel %vm491, %v747, 0.0
    %v857 = vadd.f32 %v855, %v856
    %v858 = vsel %vm491, %v748, 0.0
    %v859 = vadd.f32 %v857, %v858
    %v860 = vsel %vm491, %v749, 0.0
    %v861 = vadd.f32 %v859, %v860
    %v862 = vsel %vm491, %v750, 0.0
    %v863 = vadd.f32 %v861, %v862
    %v864 = vsel %vm491, %v751, 0.0
    %v865 = vadd.f32 %v863, %v864
    %v866 = vsel %vm491, %v752, 0.0
    %v867 = vadd.f32 %v865, %v866
    %v868 = vsel %vm491, %v753, 0.0
    %v869 = vadd.f32 %v867, %v868
    %v870 = vsel %vm491, %v754, 0.0
    %v871 = vadd.f32 %v869, %v870
    %v872 = vsel %vm491, %v755, 0.0
    %v873 = vadd.f32 %v871, %v872
    %v874 = vsel %vm491, %v756, 0.0
    %v875 = vadd.f32 %v873, %v874
    %v876 = vsel %vm491, %v757, 0.0
    %v877 = vadd.f32 %v875, %v876
    %v878 = vsel %vm491, %v758, 0.0
    %v879 = vadd.f32 %v877, %v878
    %v880 = vsel %vm491, %v759, 0.0
    %v881 = vadd.f32 %v879, %v880
    %v882 = vsel %vm491, %v760, 0.0
    %v883 = vadd.f32 %v881, %v882
    %v884 = vsel %vm491, %v761, 0.0
    %v885 = vadd.f32 %v883, %v884
    %v886 = vsel %vm491, %v762, 0.0
    %v887 = vadd.f32 %v885, %v886
    %v888 = vsel %vm491, %v763, 0.0
    %v889 = vadd.f32 %v887, %v888
    %v890 = vsel %vm491, %v764, 0.0
    %v891 = vadd.f32 %v889, %v890
    %v892 = vrot.slane %v891, 4
    %v893 = vadd.f32 %v891, %v892
    %v894 = vrot.slane %v893, 2
    %v895 = vadd.f32 %v893, %v894
    %v896 = vrot.slane %v895, 1
    %v897 = vadd.f32 %v895, %v896
    %v898 = vadd.f32 %v700, %v897
    %899 = vst.msk [vmem:[#allocation4] sm:$0x1] %vm698, %v898
    // Predicated region
    $region14: #{tpu_custom_call.1} parent=1 // pred_check
      _
    $region15: #{tpu_custom_call.1} parent=1 // pred_check_branch
      %901 = sbr.rel (0) target = $region17
    $region16: #{tpu_custom_call.1} parent=1 // pred_region
      _
    $region17: #{tpu_custom_call.1} parent=1 // pred_fallthru
      _
    // Predicated region
    $region18: #{tpu_custom_call.1} parent=1 // pred_check
      _
    $region19: #{tpu_custom_call.1} parent=1 // pred_check_branch
      %903 = sbr.rel (0) target = $region21
    $region20: #{tpu_custom_call.1} parent=1 // pred_region
      %905 = vsyncadd [#allocation3], 0
      %s907 = sshll.u32 [#allocation2], 4
      %s908 = int_to_ptr.vmem [resolvable:$true] %s907
      %s909 = sshll.u32 %s3, 4
      %s910 = int_to_ptr.hbm [resolvable:$true] %s909
      %912 = dma.vmem_to_hbm [thread:$0]  %s908, 16, %s910, [#allocation3]
    $region21: #{tpu_custom_call.1} parent=1 // pred_fallthru
      _
    // Predicated region
    $region22: #{tpu_custom_call.1} parent=1 // pred_check
      _
    $region23: #{tpu_custom_call.1} parent=1 // pred_check_branch
      %914 = sbr.rel (0) target = $region25
    $region24: #{tpu_custom_call.1} parent=1 // pred_region
      %916 = vsyncadd [#allocation5], 0
      %s918 = sshll.u32 [#allocation4], 4
      %s919 = int_to_ptr.vmem [resolvable:$true] %s918
      %s920 = sshll.u32 %s4, 4
      %s921 = int_to_ptr.hbm [resolvable:$true] %s920
      %923 = dma.vmem_to_hbm [thread:$0]  %s919, 16, %s921, [#allocation5]
    $region25: #{tpu_custom_call.1} parent=1 // pred_fallthru
      _
    // Predicated region
    $region26: #{tpu_custom_call.1} parent=1 // pred_check
      _
    $region27: #{tpu_custom_call.1} parent=1 // pred_check_branch
      %925 = sbr.rel (0) target = $region29
    $region28: #{tpu_custom_call.1} parent=1 // pred_region
      _
    $region29: #{tpu_custom_call.1} parent=1 // pred_fallthru
      _
    // Predicated region
    $region30: #{tpu_custom_call.1} parent=1 // pred_check
      _
    $region31: #{tpu_custom_call.1} parent=1 // pred_check_branch
      %927 = sbr.rel (0) target = $region33
    $region32: #{tpu_custom_call.1} parent=1 // pred_region
      %929 = dma.done [#allocation3], 16
    $region33: #{tpu_custom_call.1} parent=1 // pred_fallthru
      _
    // Predicated region
    $region34: #{tpu_custom_call.1} parent=1 // pred_check
      _
    $region35: #{tpu_custom_call.1} parent=1 // pred_check_branch
      %931 = sbr.rel (0) target = $region37
    $region36: #{tpu_custom_call.1} parent=1 // pred_region
      %933 = dma.done [#allocation5], 16
    $region37: #{tpu_custom_call.1} parent=1 // pred_fallthru
      _
    %934 = vsyncpa [#allocation3], 1
    %935 = vsyncpa [#allocation5], 1

</llo_original>
